<compile_context>
chip_gen: v7x
topology: tpu7x:2x2x1
jax: 0.10.0
libtpu: 0.0.40
codegen_flags: <defaults>
</compile_context>

<pallas_src>
import jax
import jax.numpy as jnp
from jax.experimental import pallas as pl
from jax.experimental.pallas import tpu as pltpu

# ---------------- configuration (small, module-consistent shapes) ----------------
B = 2                                  # batch
C_IN = 3                               # RGB input channels (resnet-style)
H = W = 16                             # spatial
PATCH = 4                              # patchify stem (stride == kernel == 4)
HP = H // PATCH
WP = W // PATCH
P = HP * WP                            # number of patches per image = 16
K_RAW = PATCH * PATCH * C_IN           # im2col feature size = 48
K_PAD = 128                            # lane-aligned contraction dim (data + bias col + zero pad)
VISION_DIM = 256                       # stand-in for 2048
PROJ_DIM = 128                         # stand-in for 512
B_PAD = 8                              # f32 sublane tile for the output block
EPS = 1e-12                            # norm floor (reference uses raw divide; non-zero rows identical)


# ------------------------------- Pallas kernel ------------------------------------
def vision_model_kernel(patches_ref, w_stem_ref, pool_ref, w_proj_ref, out_ref):
    """Whole batch in one grid-less invocation.

    patches_ref : (B*P, K_PAD) bf16  im2col'd patches; col K_RAW is 1.0 (bias), rest zero-pad
    w_stem_ref  : (K_PAD, V)   bf16  stem conv weight; row K_RAW is the bias, rest zero-pad
    pool_ref    : (B_PAD, B*P) bf16  block-diagonal averaging matrix (1/P per own-batch patch)
    w_proj_ref  : (V, D)       bf16  projection weight, already transposed (Linear.weight.T)
    out_ref     : (B_PAD, D)   f32   L2-normalized embeddings (rows >= B are zero)
    """
    # --- backbone stand-in: patchify conv (bias folded into the contraction) on MXU ---
    feat = jnp.dot(patches_ref[...], w_stem_ref[...],
                   preferred_element_type=jnp.float32)              # (B*P, V) f32
    feat = jnp.maximum(feat, 0.0)                                    # ReLU (f32 VPU)

    # --- global average pool as an MXU matmul (constant averaging matrix) ---
    pooled = jnp.dot(pool_ref[...], feat.astype(jnp.bfloat16),
                     preferred_element_type=jnp.float32)             # (B_PAD, V) f32

    # --- ProjectionLayer: Linear(vision_dim, proj_dim, bias=False) on MXU ---
    proj = jnp.dot(pooled.astype(jnp.bfloat16), w_proj_ref[...],
                   preferred_element_type=jnp.float32)               # (B_PAD, D) f32

    # --- L2 normalization: eps-protected rsqrt-multiply (EUP slot), f32 ---
    inv_norm = jax.lax.rsqrt(jnp.sum(proj * proj, axis=-1, keepdims=True) + EPS)
    out_ref[...] = proj * inv_norm                                   # unmasked (8,128) f32 store


# --------------------- one-time parameter preparation (hoisted) --------------------
def prepare_params(w_stem, b_stem, w_proj):
    """Runs ONCE at init: bias folding, padding, transpose, bf16 casts, pool matrix."""
    # Stem weight: rows [0:K_RAW) = conv weight, row K_RAW = bias, rest zero.
    w_stem_pad = jnp.zeros((K_PAD, VISION_DIM), jnp.float32)
    w_stem_pad = w_stem_pad.at[:K_RAW, :].set(w_stem)
    w_stem_pad = w_stem_pad.at[K_RAW, :].set(b_stem)
    w_stem_bf = w_stem_pad.astype(jnp.bfloat16)                      # (K_PAD, V)

    # Constant block-diagonal averaging matrix: row b has 1/P over its P patch columns.
    rows = jnp.arange(B_PAD)[:, None]
    cols = jnp.arange(B * P)[None, :]
    pool_bf = jnp.where((cols // P) == rows, 1.0 / P, 0.0).astype(jnp.bfloat16)  # (B_PAD, B*P)

    # torch.nn.Linear stores weight as [proj_dim, vision_dim]; kernel takes W.T.
    w_proj_t = jnp.transpose(w_proj, (1, 0)).astype(jnp.bfloat16)    # (V, D)

    return w_stem_bf, pool_bf, w_proj_t


# ------------------------------- forward wrapper -----------------------------------
@jax.jit
def vision_model_forward(pixel_values, w_stem_bf, pool_bf, w_proj_t):
    """pixel_values: [B, C, H, W] (NCHW, as in PyTorch). Params are pre-prepared."""
    b, c, h, w = pixel_values.shape
    assert (c, h, w) == (C_IN, H, W)

    # Single fused im2col: NCHW -> (B, Hp, Wp, ph, pw, C) -> (B*P, K_RAW), one transpose.
    x = pixel_values.reshape(b, C_IN, HP, PATCH, WP, PATCH)
    x = jnp.transpose(x, (0, 2, 4, 3, 5, 1)).reshape(b * P, K_RAW)

    # Pad contraction dim to 128 lanes with a ones column (folds the stem bias in).
    patches = jnp.concatenate(
        [x,
         jnp.ones((b * P, 1), x.dtype),
         jnp.zeros((b * P, K_PAD - K_RAW - 1), x.dtype)],
        axis=-1).astype(jnp.bfloat16)                                # (B*P, K_PAD) bf16

    # Grid-less invocation: every operand/output is one whole VMEM block (~180 KiB total),
    # so no pipelining, no per-step grid overhead, lane-dense loads and stores.
    out_padded = pl.pallas_call(
        vision_model_kernel,
        out_shape=jax.ShapeDtypeStruct((B_PAD, PROJ_DIM), jnp.float32),
        in_specs=[
            pl.BlockSpec(memory_space=pltpu.MemorySpace.VMEM),
            pl.BlockSpec(memory_space=pltpu.MemorySpace.VMEM),
            pl.BlockSpec(memory_space=pltpu.MemorySpace.VMEM),
            pl.BlockSpec(memory_space=pltpu.MemorySpace.VMEM),
        ],
        out_specs=pl.BlockSpec(memory_space=pltpu.MemorySpace.VMEM),
    )(patches, w_stem_bf, pool_bf, w_proj_t)

    return out_padded[:b]                                            # (B, PROJ_DIM)


# ------------------------------- pure-JAX reference ---------------------------------
def reference_forward(pixel_values, w_stem, b_stem, w_proj):
    x = pixel_values.reshape(B, C_IN, HP, PATCH, WP, PATCH)
    x = jnp.transpose(x, (0, 2, 4, 3, 5, 1)).reshape(B * P, K_RAW)
    feat = jnp.maximum(x @ w_stem + b_stem, 0.0)
    pooled = feat.reshape(B, P, VISION_DIM).mean(axis=1)
    proj = pooled @ w_proj.T
    return proj / jnp.linalg.norm(proj, axis=-1, keepdims=True)


# ------------------------------- main ----------------------------------------------
if __name__ == "__main__":
    key = jax.random.PRNGKey(0)
    k_x, k_stem_w, k_stem_b, k_proj_w = jax.random.split(key, 4)

    # Deterministic synthetic inputs/parameters (shapes follow the module's __init__).
    pixel_values = jax.random.normal(k_x, (B, C_IN, H, W), dtype=jnp.float32)
    w_stem = jax.random.normal(k_stem_w, (K_RAW, VISION_DIM), jnp.float32) * (1.0 / K_RAW ** 0.5)
    b_stem = jax.random.normal(k_stem_b, (VISION_DIM,), jnp.float32) * 0.01
    # torch.nn.Linear(vision_dim, proj_dim, bias=False): weight shape [proj_dim, vision_dim]
    w_proj = jax.random.normal(k_proj_w, (PROJ_DIM, VISION_DIM), jnp.float32) * (1.0 / VISION_DIM ** 0.5)

    # One-time weight prep (hoisted out of the per-call forward, per perf review).
    params = prepare_params(w_stem, b_stem, w_proj)

    out = vision_model_forward(pixel_values, *params)
    out = jax.block_until_ready(out)

    assert out.shape == (B, PROJ_DIM)
    # sanity: rows are L2-normalized (normalization is done in f32 inside the kernel)
    norms = jnp.sqrt(jnp.sum(out * out, axis=-1))
    assert bool(jnp.all(jnp.abs(norms - 1.0) < 1e-4))
    # sanity: matches the f32 pure-JAX reference up to bf16 MXU quantization
    ref = reference_forward(pixel_values, w_stem, b_stem, w_proj)
    assert bool(jnp.max(jnp.abs(out - ref)) < 3e-2)

    print("KERNEL_OK")
</pallas_src>

<mosaic_0001>
module attributes {stable_mosaic.version = 11 : i64} {
  func.func @vision_model_kernel(%arg0: memref<32x128xbf16, #tpu.memory_space<vmem>>, %arg1: memref<128x256xbf16, #tpu.memory_space<vmem>>, %arg2: memref<8x32xbf16, #tpu.memory_space<vmem>>, %arg3: memref<256x128xbf16, #tpu.memory_space<vmem>>, %arg4: memref<8x128xf32, #tpu.memory_space<vmem>>) attributes {dimension_semantics = [], scalar_prefetch = 0 : i64, scratch_operands = 0 : i64, tpu.core_type = #tpu.core_type<tc>} {
    %c0 = arith.constant 0 : index
    %c0_0 = arith.constant 0 : index
    %0 = vector.load %arg0[%c0, %c0_0] : memref<32x128xbf16, #tpu.memory_space<vmem>>, vector<32x128xbf16>
    %c0_1 = arith.constant 0 : index
    %c0_2 = arith.constant 0 : index
    %1 = vector.load %arg1[%c0_1, %c0_2] : memref<128x256xbf16, #tpu.memory_space<vmem>>, vector<128x256xbf16>
    %cst = arith.constant dense<0.000000e+00> : vector<32x256xf32>
    %2 = tpu.matmul %0, %1, %cst {dimension_numbers = #tpu.dot_dimension_numbers<[1], [0], [0], [1], [0, 0, 1, 1], [], []>} : vector<32x128xbf16>, vector<128x256xbf16>, vector<32x256xf32> -> vector<32x256xf32>
    %cst_3 = arith.constant 0.000000e+00 : f32
    %3 = vector.broadcast %cst_3 : f32 to vector<32x256xf32>
    %4 = arith.maximumf %2, %3 : vector<32x256xf32>
    %c0_4 = arith.constant 0 : index
    %c0_5 = arith.constant 0 : index
    %5 = vector.load %arg2[%c0_4, %c0_5] : memref<8x32xbf16, #tpu.memory_space<vmem>>, vector<8x32xbf16>
    %6 = arith.truncf %4 : vector<32x256xf32> to vector<32x256xbf16>
    %cst_6 = arith.constant dense<0.000000e+00> : vector<8x256xf32>
    %7 = tpu.matmul %5, %6, %cst_6 {dimension_numbers = #tpu.dot_dimension_numbers<[1], [0], [0], [1], [0, 0, 1, 1], [], []>} : vector<8x32xbf16>, vector<32x256xbf16>, vector<8x256xf32> -> vector<8x256xf32>
    %8 = arith.truncf %7 : vector<8x256xf32> to vector<8x256xbf16>
    %c0_7 = arith.constant 0 : index
    %c0_8 = arith.constant 0 : index
    %9 = vector.load %arg3[%c0_7, %c0_8] : memref<256x128xbf16, #tpu.memory_space<vmem>>, vector<256x128xbf16>
    %cst_9 = arith.constant dense<0.000000e+00> : vector<8x128xf32>
    %10 = tpu.matmul %8, %9, %cst_9 {dimension_numbers = #tpu.dot_dimension_numbers<[1], [0], [0], [1], [0, 0, 1, 1], [], []>} : vector<8x256xbf16>, vector<256x128xbf16>, vector<8x128xf32> -> vector<8x128xf32>
    %11 = arith.mulf %10, %10 : vector<8x128xf32>
    %cst_10 = arith.constant dense<0.000000e+00> : vector<8xf32>
    %12 = vector.multi_reduction <add>, %11, %cst_10 [1] : vector<8x128xf32> to vector<8xf32>
    %13 = vector.shape_cast %12 : vector<8xf32> to vector<8x1xf32>
    %cst_11 = arith.constant 9.99999996E-13 : f32
    %14 = vector.broadcast %cst_11 : f32 to vector<8x1xf32>
    %15 = arith.addf %13, %14 : vector<8x1xf32>
    %16 = math.rsqrt %15 : vector<8x1xf32>
    %17 = vector.broadcast %16 : vector<8x1xf32> to vector<8x128xf32>
    %18 = arith.mulf %10, %17 : vector<8x128xf32>
    %c0_12 = arith.constant 0 : index
    %c0_13 = arith.constant 0 : index
    %19 = vector.load %arg4[%c0_12, %c0_13] : memref<8x128xf32, #tpu.memory_space<vmem>>, vector<8x128xf32>
    tpu.vector_store %arg4[%c0_12, %c0_13], %18 {strides = array<i32>} : memref<8x128xf32, #tpu.memory_space<vmem>>, vector<8x128xf32>,
    return
  }
}

</mosaic_0001>

<llo_original>
// kernel: vision_model_forward.1
$region0: #{vision_model_forward.1}
  #allocation0 [shape = 'u32[]', space=smem, size = 0x4, offset = 0x4, fixed_abs, tag = 'smem constant byte address 0x4 - core index']
  #allocation1 [shape = 'u32[144,128]{1,0:T(1,128)}', space=vmem, size = 0x12000, scoped, tag = 'internal scratch']
  %s0 = inlined_call_operand.vmem [shape: bf16[32,128], index: 0, kind: input, shape index: {}]
  %s1 = inlined_call_operand.vmem [shape: bf16[128,256], index: 1, kind: input, shape index: {}]
  %s2 = inlined_call_operand.vmem [shape: bf16[8,32], index: 2, kind: input, shape index: {}]
  %s3 = inlined_call_operand.vmem [shape: bf16[256,128], index: 3, kind: input, shape index: {}]
  %s4 = inlined_call_operand.vmem [shape: f32[8,128], index: 4, kind: output, shape index: {}]
  %s5 = sld [smem:[#allocation0]]
  $region26: #{vision_model_forward.1} parent=0
    _
  %s7 = ssub.s32 1, %s5
  %s8 = scalar_select 0, %s7, %s5
  // Predicated region
  $region2: #{vision_model_forward.1} parent=0 // pred_check
    _
  $region3: #{vision_model_forward.1} parent=0 // pred_check_branch
    %10 = sbr.rel (0) target = $region5
  $region4: #{vision_model_forward.1} parent=0 // pred_region
    _
  $region5: #{vision_model_forward.1} parent=0 // pred_fallthru
    _
  // Predicated region
  $region6: #{vision_model_forward.1} parent=0 // pred_check
    _
  $region7: #{vision_model_forward.1} parent=0 // pred_check_branch
    %12 = sbr.rel (0) target = $region9
  $region8: #{vision_model_forward.1} parent=0 // pred_region
    _
  $region9: #{vision_model_forward.1} parent=0 // pred_fallthru
    _
  // Predicated region
  $region10: #{vision_model_forward.1} parent=0 // pred_check
    _
  $region11: #{vision_model_forward.1} parent=0 // pred_check_branch
    %14 = sbr.rel (0) target = $region13
  $region12: #{vision_model_forward.1} parent=0 // pred_region
    _
  $region13: #{vision_model_forward.1} parent=0 // pred_fallthru
    _
  // Predicated region
  $region14: #{vision_model_forward.1} parent=0 // pred_check
    _
  $region15: #{vision_model_forward.1} parent=0 // pred_check_branch
    %16 = sbr.rel (0) target = $region17
  $region16: #{vision_model_forward.1} parent=0 // pred_region
    _
  $region17: #{vision_model_forward.1} parent=0 // pred_fallthru
    _
  %v18 = vld [vmem:[%s0] sm:$0xf]
  %v19 = vld [vmem:[%s0 + $0x4] sm:$0xf]
  %v20 = vld [vmem:[%s0 + $0x8] sm:$0xf]
  %v21 = vld [vmem:[%s0 + $0xc] sm:$0xf]
  %v22 = vld [vmem:[%s1] sm:$0xff]
  %v23 = vld [vmem:[%s1 + $0x8] sm:$0xff]
  %v24 = vld [vmem:[%s1 + $0x10] sm:$0xff]
  %v25 = vld [vmem:[%s1 + $0x18] sm:$0xff]
  %v26 = vld [vmem:[%s1 + $0x20] sm:$0xff]
  %v27 = vld [vmem:[%s1 + $0x28] sm:$0xff]
  %v28 = vld [vmem:[%s1 + $0x30] sm:$0xff]
  %v29 = vld [vmem:[%s1 + $0x38] sm:$0xff]
  %v30 = vld [vmem:[%s1 + $0x40] sm:$0xff]
  %v31 = vld [vmem:[%s1 + $0x48] sm:$0xff]
  %v32 = vld [vmem:[%s1 + $0x50] sm:$0xff]
  %v33 = vld [vmem:[%s1 + $0x58] sm:$0xff]
  %v34 = vld [vmem:[%s1 + $0x60] sm:$0xff]
  %v35 = vld [vmem:[%s1 + $0x68] sm:$0xff]
  %v36 = vld [vmem:[%s1 + $0x70] sm:$0xff]
  %v37 = vld [vmem:[%s1 + $0x78] sm:$0xff]
  %v42 = vunpack.c.l.b16 %v18
  %v43 = vunpack.c.l.b16 %v19
  %v44 = vunpack.c.l.b16 %v20
  %v45 = vunpack.c.l.b16 %v21
  %v46 = vpack.c.b16 %v43, %v42
  %v47 = vpack.c.b16 %v45, %v44
  %v66 = vunpack.c.l.b16 %v22
  %v67 = vunpack.c.h.b16 %v22
  %v68 = vunpack.c.l.b16 %v23
  %v69 = vunpack.c.h.b16 %v23
  %v70 = vunpack.c.l.b16 %v24
  %v71 = vunpack.c.h.b16 %v24
  %v72 = vunpack.c.l.b16 %v25
  %v73 = vunpack.c.h.b16 %v25
  %v74 = vunpack.c.l.b16 %v26
  %v75 = vunpack.c.h.b16 %v26
  %v76 = vunpack.c.l.b16 %v27
  %v77 = vunpack.c.h.b16 %v27
  %v78 = vunpack.c.l.b16 %v28
  %v79 = vunpack.c.h.b16 %v28
  %v80 = vunpack.c.l.b16 %v29
  %v81 = vunpack.c.h.b16 %v29
  %v82 = vunpack.c.l.b16 %v30
  %v83 = vunpack.c.h.b16 %v30
  %v84 = vunpack.c.l.b16 %v31
  %v85 = vunpack.c.h.b16 %v31
  %v86 = vunpack.c.l.b16 %v32
  %v87 = vunpack.c.h.b16 %v32
  %v88 = vunpack.c.l.b16 %v33
  %v89 = vunpack.c.h.b16 %v33
  %v90 = vunpack.c.l.b16 %v34
  %v91 = vunpack.c.h.b16 %v34
  %v92 = vunpack.c.l.b16 %v35
  %v93 = vunpack.c.h.b16 %v35
  %v94 = vunpack.c.l.b16 %v36
  %v95 = vunpack.c.h.b16 %v36
  %v96 = vunpack.c.l.b16 %v37
  %v97 = vunpack.c.h.b16 %v37
  %v98 = vpack.c.b16 %v68, %v66
  %v99 = vpack.c.b16 %v69, %v67
  %v100 = vpack.c.b16 %v72, %v70
  %v101 = vpack.c.b16 %v73, %v71
  %v102 = vpack.c.b16 %v76, %v74
  %v103 = vpack.c.b16 %v77, %v75
  %v104 = vpack.c.b16 %v80, %v78
  %v105 = vpack.c.b16 %v81, %v79
  %v106 = vpack.c.b16 %v84, %v82
  %v107 = vpack.c.b16 %v85, %v83
  %v108 = vpack.c.b16 %v88, %v86
  %v109 = vpack.c.b16 %v89, %v87
  %v110 = vpack.c.b16 %v92, %v90
  %v111 = vpack.c.b16 %v93, %v91
  %v112 = vpack.c.b16 %v96, %v94
  %v113 = vpack.c.b16 %v97, %v95
  %130 = vmatprep.subr.bf16.mxu0 %v99
  %131 = vmatpush1.bf16.msra.mxu0 %v98
  %132 = vmatprep.subr.bf16.mxu0 %v101
  %133 = vmatpush1.bf16.msra.mxu0 %v100
  %134 = vmatprep.subr.bf16.mxu0 %v103
  %135 = vmatpush1.bf16.msra.mxu0 %v102
  %136 = vmatprep.subr.bf16.mxu0 %v105
  %137 = vmatpush1.bf16.msra.mxu0 %v104
  %138 = vmatprep.subr.bf16.mxu0 %v107
  %139 = vmatpush1.bf16.msra.mxu0 %v106
  %140 = vmatprep.subr.bf16.mxu0 %v109
  %141 = vmatpush1.bf16.msra.mxu0 %v108
  %142 = vmatprep.subr.bf16.mxu0 %v111
  %143 = vmatpush1.bf16.msra.mxu0 %v110
  %144 = vmatprep.subr.bf16.mxu0 %v113
  %145 = vmatpush1.bf16.msra.mxu0 %v112
  %146 = vmatprep.subr.bf16.mxu0 0
  %147 = vmatpush1.bf16.msra.mxu0 0
  %148 = vmatprep.subr.bf16.mxu0 0
  %149 = vmatpush1.bf16.msra.mxu0 0
  %150 = vmatprep.subr.bf16.mxu0 0
  %151 = vmatpush1.bf16.msra.mxu0 0
  %152 = vmatprep.subr.bf16.mxu0 0
  %153 = vmatpush1.bf16.msra.mxu0 0
  %154 = vmatprep.subr.bf16.mxu0 0
  %155 = vmatpush1.bf16.msra.mxu0 0
  %156 = vmatprep.subr.bf16.mxu0 0
  %157 = vmatpush1.bf16.msra.mxu0 0
  %158 = vmatprep.subr.bf16.mxu0 0
  %159 = vmatpush1.bf16.msra.mxu0 0
  %160 = vmatprep.subr.bf16.mxu0 0
  %161 = vmatpush1.bf16.msra.mxu0 0
  %162 = vmatprep.mubr.bf16.mxu0 0
  %163 = vmatmul.mubr.bf16.gmra.mrb[0].mxu0 %v46
  %v164 = vpop.f32.mrb[0].mxu0
  %v165 = vadd.f32 0.0, %v164
  %v166 = vpop.f32.mrb[0].mxu0
  %v167 = vadd.f32 0.0, %v166
  %v168 = vpop.f32.mrb[0].mxu0
  %v169 = vadd.f32 0.0, %v168
  %v170 = vpop.f32.mrb[0].mxu0
  %v171 = vadd.f32 0.0, %v170
  %172 = vmatprep.mubr.bf16.mxu0 0
  %173 = vmatmul.mubr.bf16.gmra.mrb[0].mxu0 %v47
  %v174 = vpop.f32.mrb[0].mxu0
  %v175 = vadd.f32 0.0, %v174
  %v176 = vpop.f32.mrb[0].mxu0
  %v177 = vadd.f32 0.0, %v176
  %v178 = vpop.f32.mrb[0].mxu0
  %v179 = vadd.f32 0.0, %v178
  %v180 = vpop.f32.mrb[0].mxu0
  %v181 = vadd.f32 0.0, %v180
  %182 = vdwg.mxu0
  %v183 = vmax.f32 %v165, 0.0
  %v184 = vmax.f32 %v167, 0.0
  %v185 = vmax.f32 %v169, 0.0
  %v186 = vmax.f32 %v171, 0.0
  %v187 = vmax.f32 %v175, 0.0
  %v188 = vmax.f32 %v177, 0.0
  %v189 = vmax.f32 %v179, 0.0
  %v190 = vmax.f32 %v181, 0.0
  %v191 = vld [vmem:[%s2] sm:$0xf]
  %v192 = vpack.c.bf16 %v185, %v183
  %v193 = vpack.c.bf16 %v186, %v184
  %v194 = vpack.c.bf16 %v189, %v187
  %v195 = vpack.c.bf16 %v190, %v188
  %vm196 = vcmask 261120
  %v198 = vsel %vm196, %v191, 0
  %200 = vmatprep.subr.bf16.mxu0 %v193
  %201 = vmatpush1.bf16.msra.mxu0 %v192
  %202 = vmatprep.subr.bf16.mxu0 %v195
  %203 = vmatpush1.bf16.msra.mxu0 %v194
  %204 = vmatprep.subr.bf16.mxu0 0
  %205 = vmatpush1.bf16.msra.mxu0 0
  %206 = vmatprep.subr.bf16.mxu0 0
  %207 = vmatpush1.bf16.msra.mxu0 0
  %208 = vmatprep.subr.bf16.mxu0 0
  %209 = vmatpush1.bf16.msra.mxu0 0
  %210 = vmatprep.subr.bf16.mxu0 0
  %211 = vmatpush1.bf16.msra.mxu0 0
  %212 = vmatprep.subr.bf16.mxu0 0
  %213 = vmatpush1.bf16.msra.mxu0 0
  %214 = vmatprep.subr.bf16.mxu0 0
  %215 = vmatpush1.bf16.msra.mxu0 0
  %216 = vmatprep.subr.bf16.mxu0 0
  %217 = vmatpush1.bf16.msra.mxu0 0
  %218 = vmatprep.subr.bf16.mxu0 0
  %219 = vmatpush1.bf16.msra.mxu0 0
  %220 = vmatprep.subr.bf16.mxu0 0
  %221 = vmatpush1.bf16.msra.mxu0 0
  %222 = vmatprep.subr.bf16.mxu0 0
  %223 = vmatpush1.bf16.msra.mxu0 0
  %224 = vmatprep.subr.bf16.mxu0 0
  %225 = vmatpush1.bf16.msra.mxu0 0
  %226 = vmatprep.subr.bf16.mxu0 0
  %227 = vmatpush1.bf16.msra.mxu0 0
  %228 = vmatprep.subr.bf16.mxu0 0
  %229 = vmatpush1.bf16.msra.mxu0 0
  %230 = vmatprep.subr.bf16.mxu0 0
  %231 = vmatpush1.bf16.msra.mxu0 0
  %232 = vmatprep.mubr.bf16.mxu0 0
  %233 = vmatmul.mubr.bf16.gmra.mrb[0].mxu0 %v198
  %v234 = vpop.f32.mrb[0].mxu0
  %v235 = vadd.f32 0.0, %v234
  %v236 = vpop.f32.mrb[0].mxu0
  %v237 = vadd.f32 0.0, %v236
  %v238 = vpop.f32.mrb[0].mxu0
  %v239 = vpop.f32.mrb[0].mxu0
  %240 = vdwg.mxu0
  %v241 = vpack.c.bf16 %v235, %v235
  %v242 = vpack.c.bf16 %v237, %v237
  %v243 = vld [vmem:[%s3] sm:$0xf]
  %v244 = vld [vmem:[%s3 + $0x4] sm:$0xf]
  %v245 = vld [vmem:[%s3 + $0x8] sm:$0xf]
  %v246 = vld [vmem:[%s3 + $0xc] sm:$0xf]
  %v247 = vld [vmem:[%s3 + $0x10] sm:$0xf]
  %v248 = vld [vmem:[%s3 + $0x14] sm:$0xf]
  %v249 = vld [vmem:[%s3 + $0x18] sm:$0xf]
  %v250 = vld [vmem:[%s3 + $0x1c] sm:$0xf]
  %v251 = vld [vmem:[%s3 + $0x20] sm:$0xf]
  %v252 = vld [vmem:[%s3 + $0x24] sm:$0xf]
  %v253 = vld [vmem:[%s3 + $0x28] sm:$0xf]
  %v254 = vld [vmem:[%s3 + $0x2c] sm:$0xf]
  %v255 = vld [vmem:[%s3 + $0x30] sm:$0xf]
  %v256 = vld [vmem:[%s3 + $0x34] sm:$0xf]
  %v257 = vld [vmem:[%s3 + $0x38] sm:$0xf]
  %v258 = vld [vmem:[%s3 + $0x3c] sm:$0xf]
  %v259 = vld [vmem:[%s3 + $0x40] sm:$0xf]
  %v260 = vld [vmem:[%s3 + $0x44] sm:$0xf]
  %v261 = vld [vmem:[%s3 + $0x48] sm:$0xf]
  %v262 = vld [vmem:[%s3 + $0x4c] sm:$0xf]
  %v263 = vld [vmem:[%s3 + $0x50] sm:$0xf]
  %v264 = vld [vmem:[%s3 + $0x54] sm:$0xf]
  %v265 = vld [vmem:[%s3 + $0x58] sm:$0xf]
  %v266 = vld [vmem:[%s3 + $0x5c] sm:$0xf]
  %v267 = vld [vmem:[%s3 + $0x60] sm:$0xf]
  %v268 = vld [vmem:[%s3 + $0x64] sm:$0xf]
  %v269 = vld [vmem:[%s3 + $0x68] sm:$0xf]
  %v270 = vld [vmem:[%s3 + $0x6c] sm:$0xf]
  %v271 = vld [vmem:[%s3 + $0x70] sm:$0xf]
  %v272 = vld [vmem:[%s3 + $0x74] sm:$0xf]
  %v273 = vld [vmem:[%s3 + $0x78] sm:$0xf]
  %v274 = vld [vmem:[%s3 + $0x7c] sm:$0xf]
  %v307 = vunpack.c.l.b16 %v243
  %v308 = vunpack.c.l.b16 %v244
  %v309 = vunpack.c.l.b16 %v245
  %v310 = vunpack.c.l.b16 %v246
  %v311 = vunpack.c.l.b16 %v247
  %v312 = vunpack.c.l.b16 %v248
  %v313 = vunpack.c.l.b16 %v249
  %v314 = vunpack.c.l.b16 %v250
  %v315 = vunpack.c.l.b16 %v251
  %v316 = vunpack.c.l.b16 %v252
  %v317 = vunpack.c.l.b16 %v253
  %v318 = vunpack.c.l.b16 %v254
  %v319 = vunpack.c.l.b16 %v255
  %v320 = vunpack.c.l.b16 %v256
  %v321 = vunpack.c.l.b16 %v257
  %v322 = vunpack.c.l.b16 %v258
  %v323 = vunpack.c.l.b16 %v259
  %v324 = vunpack.c.l.b16 %v260
  %v325 = vunpack.c.l.b16 %v261
  %v326 = vunpack.c.l.b16 %v262
  %v327 = vunpack.c.l.b16 %v263
  %v328 = vunpack.c.l.b16 %v264
  %v329 = vunpack.c.l.b16 %v265
  %v330 = vunpack.c.l.b16 %v266
  %v331 = vunpack.c.l.b16 %v267
  %v332 = vunpack.c.l.b16 %v268
  %v333 = vunpack.c.l.b16 %v269
  %v334 = vunpack.c.l.b16 %v270
  %v335 = vunpack.c.l.b16 %v271
  %v336 = vunpack.c.l.b16 %v272
  %v337 = vunpack.c.l.b16 %v273
  %v338 = vunpack.c.l.b16 %v274
  %v339 = vpack.c.b16 %v308, %v307
  %v340 = vpack.c.b16 %v310, %v309
  %v341 = vpack.c.b16 %v312, %v311
  %v342 = vpack.c.b16 %v314, %v313
  %v343 = vpack.c.b16 %v316, %v315
  %v344 = vpack.c.b16 %v318, %v317
  %v345 = vpack.c.b16 %v320, %v319
  %v346 = vpack.c.b16 %v322, %v321
  %v347 = vpack.c.b16 %v324, %v323
  %v348 = vpack.c.b16 %v326, %v325
  %v349 = vpack.c.b16 %v328, %v327
  %v350 = vpack.c.b16 %v330, %v329
  %v351 = vpack.c.b16 %v332, %v331
  %v352 = vpack.c.b16 %v334, %v333
  %v353 = vpack.c.b16 %v336, %v335
  %v354 = vpack.c.b16 %v338, %v337
  %371 = vmatprep.subr.bf16.mxu0 0
  %372 = vmatpush1.bf16.msra.mxu0 %v339
  %373 = vmatprep.subr.bf16.mxu0 0
  %374 = vmatpush1.bf16.msra.mxu0 %v340
  %375 = vmatprep.subr.bf16.mxu0 0
  %376 = vmatpush1.bf16.msra.mxu0 %v341
  %377 = vmatprep.subr.bf16.mxu0 0
  %378 = vmatpush1.bf16.msra.mxu0 %v342
  %379 = vmatprep.subr.bf16.mxu0 0
  %380 = vmatpush1.bf16.msra.mxu0 %v343
  %381 = vmatprep.subr.bf16.mxu0 0
  %382 = vmatpush1.bf16.msra.mxu0 %v344
  %383 = vmatprep.subr.bf16.mxu0 0
  %384 = vmatpush1.bf16.msra.mxu0 %v345
  %385 = vmatprep.subr.bf16.mxu0 0
  %386 = vmatpush1.bf16.msra.mxu0 %v346
  %387 = vmatprep.subr.bf16.mxu0 0
  %388 = vmatpush1.bf16.msra.mxu0 %v347
  %389 = vmatprep.subr.bf16.mxu0 0
  %390 = vmatpush1.bf16.msra.mxu0 %v348
  %391 = vmatprep.subr.bf16.mxu0 0
  %392 = vmatpush1.bf16.msra.mxu0 %v349
  %393 = vmatprep.subr.bf16.mxu0 0
  %394 = vmatpush1.bf16.msra.mxu0 %v350
  %395 = vmatprep.subr.bf16.mxu0 0
  %396 = vmatpush1.bf16.msra.mxu0 %v351
  %397 = vmatprep.subr.bf16.mxu0 0
  %398 = vmatpush1.bf16.msra.mxu0 %v352
  %399 = vmatprep.subr.bf16.mxu0 0
  %400 = vmatpush1.bf16.msra.mxu0 %v353
  %401 = vmatprep.subr.bf16.mxu0 0
  %402 = vmatpush1.bf16.msra.mxu0 %v354
  %403 = vmatprep.mubr.bf16.mxu0 %v242
  %404 = vmatmul.mubr.bf16.gmra.mrb[0].mxu0 %v241
  %v405 = vpop.f32.mrb[0].mxu0
  %v406 = vadd.f32 0.0, %v405
  %v407 = vpop.f32.mrb[0].mxu0
  %v408 = vpop.f32.mrb[0].mxu0
  %v409 = vpop.f32.mrb[0].mxu0
  %410 = vdwg.mxu0
  %v411 = vmul.f32 %v406, %v406
  %412 = vadd.xlane.f32.xlu0 %v411
  %v413 = vpop.xlane.xlu0 %412
  %v414 = vadd.f32 %v413, 1e-12
  %v415 = vrsqrt.pop %v414
  %v416 = vmul.f32 %v406, %v415
  %417 = vst [vmem:[%s4] sm:$0xff] %v416
  // Predicated region
  $region18: #{vision_model_forward.1} parent=0 // pred_check
    _
  $region19: #{vision_model_forward.1} parent=0 // pred_check_branch
    %419 = sbr.rel (0) target = $region21
  $region20: #{vision_model_forward.1} parent=0 // pred_region
    _
  $region21: #{vision_model_forward.1} parent=0 // pred_fallthru
    _
  // Predicated region
  $region22: #{vision_model_forward.1} parent=0 // pred_check
    _
  $region23: #{vision_model_forward.1} parent=0 // pred_check_branch
    %421 = sbr.rel (0) target = $region25
  $region24: #{vision_model_forward.1} parent=0 // pred_region
    _
  $region25: #{vision_model_forward.1} parent=0 // pred_fallthru
    _

</llo_original>
